<compile_context>
chip_gen: v7x
topology: tpu7x:2x2x1
jax: 0.10.0
libtpu: 0.0.40
codegen_flags: <defaults>
</compile_context>

<pallas_src>
import functools

import numpy as np
import jax
import jax.numpy as jnp
from jax.experimental import pallas as pl
from jax.experimental.pallas import tpu as pltpu


def _depth_projector_kernel(coeffs_ref, pix_ref, depth_ref, img_ref,
                            warped_ref, mask_ref, *, C, H, W):
    """One grid step = (batch b, output tile t of TN points)."""
    b = pl.program_id(0)
    fW = jnp.float32(W - 1)
    fH = jnp.float32(H - 1)

    TN = warped_ref.shape[-1]

    xg = pix_ref[0:1, :]              # (1, TN) output-pixel x
    yg = pix_ref[1:2, :]              # (1, TN) output-pixel y
    d = depth_ref[0]                  # (1, TN)

    def ik(i, j):                     # inv_K[:3, :3]
        return coeffs_ref[b, i * 3 + j]

    def pm(i, j):                     # P = (K @ T)[:3, :]
        return coeffs_ref[b, 9 + i * 4 + j]

    # cam_points = depth * (inv_K[:3,:3] @ [x, y, 1])
    cx = (ik(0, 0) * xg + ik(0, 1) * yg + ik(0, 2)) * d
    cy = (ik(1, 0) * xg + ik(1, 1) * yg + ik(1, 2)) * d
    cz = (ik(2, 0) * xg + ik(2, 1) * yg + ik(2, 2)) * d

    # cam_points = P @ [cam; 1]
    px = pm(0, 0) * cx + pm(0, 1) * cy + pm(0, 2) * cz + pm(0, 3)
    py = pm(1, 0) * cx + pm(1, 1) * cy + pm(1, 2) * cz + pm(1, 3)
    pz = pm(2, 0) * cx + pm(2, 1) * cy + pm(2, 2) * cz + pm(2, 3)

    # One exact divide, two multiplies (do NOT use approx reciprocal here:
    # pixel-coordinate error would perturb the bilinear weights).
    inv = 1.0 / (pz + jnp.float32(1e-8))
    sx = px * inv                     # un-normalized sample x
    sy = py * inv                     # un-normalized sample y

    # normalize to [-1, 1] exactly like the PyTorch module
    u = (sx / fW - 0.5) * 2.0
    v = (sy / fH - 0.5) * 2.0

    inb = (u >= -1.0) & (u <= 1.0) & (v >= -1.0) & (v <= 1.0)
    mask_ref[0] = inb.astype(jnp.float32)        # (1, TN), lane-dense store

    # grid_sample(bilinear, border, align_corners=True):
    # un-normalize, clamp to border, then separable hat weights.
    ix = jnp.clip((u + 1.0) * 0.5 * fW, 0.0, fW)     # (1, TN)
    iy = jnp.clip((v + 1.0) * 0.5 * fH, 0.0, fH)     # (1, TN)

    x_src = jax.lax.broadcasted_iota(jnp.int32, (W, TN), 0).astype(jnp.float32)
    y_src = jax.lax.broadcasted_iota(jnp.int32, (H, TN), 0).astype(jnp.float32)
    wx = jnp.maximum(0.0, 1.0 - jnp.abs(ix - x_src))     # (W, TN)
    wy = jnp.maximum(0.0, 1.0 - jnp.abs(iy - y_src))     # (H, TN)

    # Contract x on the MXU: (C*H, W) @ (W, TN) -> (C*H, TN)
    img2d = img_ref[0]                                    # (C*H, W), resident per batch
    tmp = jnp.dot(img2d, wx, preferred_element_type=jnp.float32)
    tmp = tmp.reshape(C, H, TN)

    # Contract y on VPU/XLU: multiply by wy and reduce over rows.
    warped_ref[0] = jnp.sum(tmp * wy.reshape(1, H, TN), axis=1)   # (C, TN)


def _pick_tile_n(N, target):
    """Largest multiple of 128 dividing N, capped at `target`; else full N."""
    if N % 128 != 0:
        return N
    tn = min(max(target, 128), N)
    tn = (tn // 128) * 128
    while N % tn != 0:
        tn -= 128
    return tn


def depth_projector_forward(depth, inv_K, T, K, img, is_mask=False, tile_n=256):
    B, C, H, W = img.shape
    N = H * W
    TN = _pick_tile_n(N, tile_n)

    # Output-pixel coordinate table (the module's pix_coords buffer), point-last.
    xs, ys = np.meshgrid(np.arange(W), np.arange(H), indexing='xy')
    pix = jnp.asarray(np.stack([xs.reshape(-1), ys.reshape(-1)], axis=0),
                      dtype=jnp.float32)                              # (2, N)

    # Tiny per-batch matrix glue (4x4 matmul), packed into one SMEM coeff table.
    invK3 = inv_K[:, :3, :3].reshape(B, 9)
    P = jnp.einsum('bij,bjk->bik', K, T)[:, :3, :].reshape(B, 12)
    coeffs = jnp.concatenate([invK3, P], axis=1).astype(jnp.float32)  # (B, 21)

    depth_flat = depth.reshape(B, 1, N).astype(jnp.float32)           # free reshape
    img_flat = img.reshape(B, C * H, W).astype(jnp.float32)           # free NCHW view

    kernel = functools.partial(_depth_projector_kernel, C=C, H=H, W=W)
    warped_flat, mask_flat = pl.pallas_call(
        kernel,
        out_shape=(jax.ShapeDtypeStruct((B, C, N), jnp.float32),
                   jax.ShapeDtypeStruct((B, 1, N), jnp.float32)),
        grid_spec=pltpu.PrefetchScalarGridSpec(
            num_scalar_prefetch=0,
            grid=(B, N // TN),
            in_specs=[
                pl.BlockSpec(memory_space=pltpu.MemorySpace.SMEM),     # coeffs (B,21)
                pl.BlockSpec((2, TN), lambda b, t: (0, t)),            # pix (2,N)
                pl.BlockSpec((1, 1, TN), lambda b, t: (b, 0, t)),      # depth (B,1,N)
                pl.BlockSpec((1, C * H, W), lambda b, t: (b, 0, 0)),   # img, resident
            ],
            out_specs=[
                pl.BlockSpec((1, C, TN), lambda b, t: (b, 0, t)),      # warped (B,C,N)
                pl.BlockSpec((1, 1, TN), lambda b, t: (b, 0, t)),      # mask (B,1,N)
            ],
        ),
        compiler_params=pltpu.CompilerParams(
            dimension_semantics=("parallel", "parallel"),
            vmem_limit_bytes=32 * 1024 * 1024),
    )(coeffs, pix, depth_flat, img_flat)

    warped = warped_flat.reshape(B, C, H, W)                          # free reshape
    mask = mask_flat.reshape(B, 1, H, W) if is_mask else None
    return warped, mask


def depth_projector_reference(depth, inv_K, T, K, img, is_mask=False):
    """Pure-JAX reference (gather based grid_sample) mirroring PyTorch semantics."""
    B, C, H, W = img.shape
    N = H * W
    xs, ys = np.meshgrid(np.arange(W), np.arange(H), indexing='xy')
    pix = jnp.asarray(np.stack([xs.reshape(-1), ys.reshape(-1), np.ones(N)], 0),
                      dtype=jnp.float32)                                # (3, N)
    cam = jnp.einsum('bij,jn->bin', inv_K[:, :3, :3], pix)
    cam = depth.reshape(B, 1, N) * cam
    cam = jnp.concatenate([cam, jnp.ones((B, 1, N), jnp.float32)], axis=1)
    P = jnp.einsum('bij,bjk->bik', K, T)[:, :3, :]
    cp = jnp.einsum('bij,bjn->bin', P, cam)
    pc = cp[:, :2, :] / (cp[:, 2:3, :] + 1e-8)
    pc = pc.reshape(B, 2, H, W).transpose(0, 2, 3, 1)                   # (B,H,W,2)
    u = (pc[..., 0] / (W - 1) - 0.5) * 2.0
    v = (pc[..., 1] / (H - 1) - 0.5) * 2.0

    ix = jnp.clip((u + 1.0) * 0.5 * (W - 1), 0.0, W - 1)
    iy = jnp.clip((v + 1.0) * 0.5 * (H - 1), 0.0, H - 1)
    x0f, y0f = jnp.floor(ix), jnp.floor(iy)
    x0 = jnp.clip(x0f.astype(jnp.int32), 0, W - 1)
    x1 = jnp.clip(x0 + 1, 0, W - 1)
    y0 = jnp.clip(y0f.astype(jnp.int32), 0, H - 1)
    y1 = jnp.clip(y0 + 1, 0, H - 1)
    wx1, wy1 = ix - x0f, iy - y0f
    wx0, wy0 = 1.0 - wx1, 1.0 - wy1

    flat = img.reshape(B, C, N)

    def samp(yi, xi):
        idx = jnp.broadcast_to((yi * W + xi).reshape(B, 1, N), (B, C, N))
        return jnp.take_along_axis(flat, idx, axis=2).reshape(B, C, H, W)

    def wb(w):
        return w.reshape(B, 1, H, W)

    warped = (wb(wy0 * wx0) * samp(y0, x0) + wb(wy0 * wx1) * samp(y0, x1) +
              wb(wy1 * wx0) * samp(y1, x0) + wb(wy1 * wx1) * samp(y1, x1))
    mask = None
    if is_mask:
        m = ((u >= -1) & (u <= 1) & (v >= -1) & (v <= 1)).astype(jnp.float32)
        mask = m.reshape(B, 1, H, W)
    return warped, mask


if __name__ == "__main__":
    B, C, H, W = 2, 4, 16, 16
    key = jax.random.PRNGKey(0)
    kd, ki = jax.random.split(key)
    depth = jax.random.uniform(kd, (B, 1, H, W), jnp.float32, minval=1.0, maxval=5.0)
    img = jax.random.uniform(ki, (B, C, H, W), jnp.float32)

    fx, fy = 0.9 * W, 0.9 * H
    cx0, cy0 = (W - 1) / 2.0, (H - 1) / 2.0
    K1 = jnp.array([[fx, 0., cx0, 0.],
                    [0., fy, cy0, 0.],
                    [0., 0., 1., 0.],
                    [0., 0., 0., 1.]], jnp.float32)
    invK1 = jnp.array([[1. / fx, 0., -cx0 / fx, 0.],
                       [0., 1. / fy, -cy0 / fy, 0.],
                       [0., 0., 1., 0.],
                       [0., 0., 0., 1.]], jnp.float32)
    K = jnp.stack([K1, K1])
    inv_K = jnp.stack([invK1, invK1])

    a = 0.05
    ca, sa = float(np.cos(a)), float(np.sin(a))
    T0 = jnp.array([[ca, -sa, 0., 0.08],
                    [sa, ca, 0., -0.05],
                    [0., 0., 1., 0.15],
                    [0., 0., 0., 1.]], jnp.float32)
    T1 = jnp.array([[1., 0., 0., -0.10],
                    [0., ca, -sa, 0.06],
                    [0., sa, ca, -0.10],
                    [0., 0., 0., 1.]], jnp.float32)
    T = jnp.stack([T0, T1])

    # tile_n=128 exercises the multi-tile grid (N=256 -> grid=(B, 2)).
    warped, mask = depth_projector_forward(depth, inv_K, T, K, img,
                                           is_mask=True, tile_n=128)
    warped = jax.block_until_ready(warped)
    mask = jax.block_until_ready(mask)

    warped_ref, mask_ref = depth_projector_reference(depth, inv_K, T, K, img, is_mask=True)
    np.testing.assert_allclose(np.asarray(warped), np.asarray(warped_ref),
                               rtol=1e-3, atol=1e-3)
    assert mask.shape == (B, 1, H, W)
    assert set(np.unique(np.asarray(mask))).issubset({0.0, 1.0})
    # mask is a hard threshold; allow (rare) fp boundary disagreements.
    assert np.mean(np.asarray(mask) == np.asarray(mask_ref)) > 0.99

    print("KERNEL_OK")
</pallas_src>

<mosaic_0001>
module attributes {stable_mosaic.version = 11 : i64} {
  func.func @_depth_projector_kernel(%arg0: i32, %arg1: i32, %arg2: memref<2x21xf32, #tpu.memory_space<smem>>, %arg3: memref<2x128xf32, #tpu.memory_space<vmem>>, %arg4: memref<1x1x128xf32, #tpu.memory_space<vmem>>, %arg5: memref<1x64x16xf32, #tpu.memory_space<vmem>>, %arg6: memref<1x4x128xf32, #tpu.memory_space<vmem>>, %arg7: memref<1x1x128xf32, #tpu.memory_space<vmem>>) attributes {dimension_semantics = [#tpu.dimension_semantics<parallel>, #tpu.dimension_semantics<parallel>], iteration_bounds = array<i64: 2, 2>, scalar_prefetch = 0 : i64, scratch_operands = 0 : i64, tpu.core_type = #tpu.core_type<tc>, window_params = [{transform_indices = @transform_0, window_bounds = array<i64: 2, 21>}, {transform_indices = @transform_1, window_bounds = array<i64: 2, 128>}, {transform_indices = @transform_2, window_bounds = array<i64: 1, 1, 128>}, {transform_indices = @transform_3, window_bounds = array<i64: 1, 64, 16>}, {transform_indices = @transform_4, window_bounds = array<i64: 1, 4, 128>}, {transform_indices = @transform_5, window_bounds = array<i64: 1, 1, 128>}]} {
    %c0 = arith.constant 0 : index
    %c0_0 = arith.constant 0 : index
    %0 = vector.load %arg3[%c0, %c0_0] : memref<2x128xf32, #tpu.memory_space<vmem>>, vector<1x128xf32>
    %c1 = arith.constant 1 : index
    %c0_1 = arith.constant 0 : index
    %1 = vector.load %arg3[%c1, %c0_1] : memref<2x128xf32, #tpu.memory_space<vmem>>, vector<1x128xf32>
    %c0_2 = arith.constant 0 : index
    %c0_3 = arith.constant 0 : index
    %c0_4 = arith.constant 0 : index
    %2 = vector.load %arg4[%c0_2, %c0_3, %c0_4] : memref<1x1x128xf32, #tpu.memory_space<vmem>>, vector<1x1x128xf32>
    %3 = vector.shape_cast %2 : vector<1x1x128xf32> to vector<1x128xf32>
    %4 = arith.index_cast %arg0 : i32 to index
    %c0_5 = arith.constant 0 : index
    %5 = memref.load %arg2[%4, %c0_5] : memref<2x21xf32, #tpu.memory_space<smem>>
    %6 = vector.broadcast %5 : f32 to vector<1x128xf32>
    %7 = arith.mulf %6, %0 : vector<1x128xf32>
    %8 = arith.index_cast %arg0 : i32 to index
    %c1_6 = arith.constant 1 : index
    %9 = memref.load %arg2[%8, %c1_6] : memref<2x21xf32, #tpu.memory_space<smem>>
    %10 = vector.broadcast %9 : f32 to vector<1x128xf32>
    %11 = arith.mulf %10, %1 : vector<1x128xf32>
    %12 = arith.addf %7, %11 : vector<1x128xf32>
    %13 = arith.index_cast %arg0 : i32 to index
    %c2 = arith.constant 2 : index
    %14 = memref.load %arg2[%13, %c2] : memref<2x21xf32, #tpu.memory_space<smem>>
    %15 = vector.broadcast %14 : f32 to vector<1x128xf32>
    %16 = arith.addf %12, %15 : vector<1x128xf32>
    %17 = arith.mulf %16, %3 : vector<1x128xf32>
    %18 = arith.index_cast %arg0 : i32 to index
    %c3 = arith.constant 3 : index
    %19 = memref.load %arg2[%18, %c3] : memref<2x21xf32, #tpu.memory_space<smem>>
    %20 = vector.broadcast %19 : f32 to vector<1x128xf32>
    %21 = arith.mulf %20, %0 : vector<1x128xf32>
    %22 = arith.index_cast %arg0 : i32 to index
    %c4 = arith.constant 4 : index
    %23 = memref.load %arg2[%22, %c4] : memref<2x21xf32, #tpu.memory_space<smem>>
    %24 = vector.broadcast %23 : f32 to vector<1x128xf32>
    %25 = arith.mulf %24, %1 : vector<1x128xf32>
    %26 = arith.addf %21, %25 : vector<1x128xf32>
    %27 = arith.index_cast %arg0 : i32 to index
    %c5 = arith.constant 5 : index
    %28 = memref.load %arg2[%27, %c5] : memref<2x21xf32, #tpu.memory_space<smem>>
    %29 = vector.broadcast %28 : f32 to vector<1x128xf32>
    %30 = arith.addf %26, %29 : vector<1x128xf32>
    %31 = arith.mulf %30, %3 : vector<1x128xf32>
    %32 = arith.index_cast %arg0 : i32 to index
    %c6 = arith.constant 6 : index
    %33 = memref.load %arg2[%32, %c6] : memref<2x21xf32, #tpu.memory_space<smem>>
    %34 = vector.broadcast %33 : f32 to vector<1x128xf32>
    %35 = arith.mulf %34, %0 : vector<1x128xf32>
    %36 = arith.index_cast %arg0 : i32 to index
    %c7 = arith.constant 7 : index
    %37 = memref.load %arg2[%36, %c7] : memref<2x21xf32, #tpu.memory_space<smem>>
    %38 = vector.broadcast %37 : f32 to vector<1x128xf32>
    %39 = arith.mulf %38, %1 : vector<1x128xf32>
    %40 = arith.addf %35, %39 : vector<1x128xf32>
    %41 = arith.index_cast %arg0 : i32 to index
    %c8 = arith.constant 8 : index
    %42 = memref.load %arg2[%41, %c8] : memref<2x21xf32, #tpu.memory_space<smem>>
    %43 = vector.broadcast %42 : f32 to vector<1x128xf32>
    %44 = arith.addf %40, %43 : vector<1x128xf32>
    %45 = arith.mulf %44, %3 : vector<1x128xf32>
    %46 = arith.index_cast %arg0 : i32 to index
    %c9 = arith.constant 9 : index
    %47 = memref.load %arg2[%46, %c9] : memref<2x21xf32, #tpu.memory_space<smem>>
    %48 = vector.broadcast %47 : f32 to vector<1x128xf32>
    %49 = arith.mulf %48, %17 : vector<1x128xf32>
    %50 = arith.index_cast %arg0 : i32 to index
    %c10 = arith.constant 10 : index
    %51 = memref.load %arg2[%50, %c10] : memref<2x21xf32, #tpu.memory_space<smem>>
    %52 = vector.broadcast %51 : f32 to vector<1x128xf32>
    %53 = arith.mulf %52, %31 : vector<1x128xf32>
    %54 = arith.addf %49, %53 : vector<1x128xf32>
    %55 = arith.index_cast %arg0 : i32 to index
    %c11 = arith.constant 11 : index
    %56 = memref.load %arg2[%55, %c11] : memref<2x21xf32, #tpu.memory_space<smem>>
    %57 = vector.broadcast %56 : f32 to vector<1x128xf32>
    %58 = arith.mulf %57, %45 : vector<1x128xf32>
    %59 = arith.addf %54, %58 : vector<1x128xf32>
    %60 = arith.index_cast %arg0 : i32 to index
    %c12 = arith.constant 12 : index
    %61 = memref.load %arg2[%60, %c12] : memref<2x21xf32, #tpu.memory_space<smem>>
    %62 = vector.broadcast %61 : f32 to vector<1x128xf32>
    %63 = arith.addf %59, %62 : vector<1x128xf32>
    %64 = arith.index_cast %arg0 : i32 to index
    %c13 = arith.constant 13 : index
    %65 = memref.load %arg2[%64, %c13] : memref<2x21xf32, #tpu.memory_space<smem>>
    %66 = vector.broadcast %65 : f32 to vector<1x128xf32>
    %67 = arith.mulf %66, %17 : vector<1x128xf32>
    %68 = arith.index_cast %arg0 : i32 to index
    %c14 = arith.constant 14 : index
    %69 = memref.load %arg2[%68, %c14] : memref<2x21xf32, #tpu.memory_space<smem>>
    %70 = vector.broadcast %69 : f32 to vector<1x128xf32>
    %71 = arith.mulf %70, %31 : vector<1x128xf32>
    %72 = arith.addf %67, %71 : vector<1x128xf32>
    %73 = arith.index_cast %arg0 : i32 to index
    %c15 = arith.constant 15 : index
    %74 = memref.load %arg2[%73, %c15] : memref<2x21xf32, #tpu.memory_space<smem>>
    %75 = vector.broadcast %74 : f32 to vector<1x128xf32>
    %76 = arith.mulf %75, %45 : vector<1x128xf32>
    %77 = arith.addf %72, %76 : vector<1x128xf32>
    %78 = arith.index_cast %arg0 : i32 to index
    %c16 = arith.constant 16 : index
    %79 = memref.load %arg2[%78, %c16] : memref<2x21xf32, #tpu.memory_space<smem>>
    %80 = vector.broadcast %79 : f32 to vector<1x128xf32>
    %81 = arith.addf %77, %80 : vector<1x128xf32>
    %82 = arith.index_cast %arg0 : i32 to index
    %c17 = arith.constant 17 : index
    %83 = memref.load %arg2[%82, %c17] : memref<2x21xf32, #tpu.memory_space<smem>>
    %84 = vector.broadcast %83 : f32 to vector<1x128xf32>
    %85 = arith.mulf %84, %17 : vector<1x128xf32>
    %86 = arith.index_cast %arg0 : i32 to index
    %c18 = arith.constant 18 : index
    %87 = memref.load %arg2[%86, %c18] : memref<2x21xf32, #tpu.memory_space<smem>>
    %88 = vector.broadcast %87 : f32 to vector<1x128xf32>
    %89 = arith.mulf %88, %31 : vector<1x128xf32>
    %90 = arith.addf %85, %89 : vector<1x128xf32>
    %91 = arith.index_cast %arg0 : i32 to index
    %c19 = arith.constant 19 : index
    %92 = memref.load %arg2[%91, %c19] : memref<2x21xf32, #tpu.memory_space<smem>>
    %93 = vector.broadcast %92 : f32 to vector<1x128xf32>
    %94 = arith.mulf %93, %45 : vector<1x128xf32>
    %95 = arith.addf %90, %94 : vector<1x128xf32>
    %96 = arith.index_cast %arg0 : i32 to index
    %c20 = arith.constant 20 : index
    %97 = memref.load %arg2[%96, %c20] : memref<2x21xf32, #tpu.memory_space<smem>>
    %98 = vector.broadcast %97 : f32 to vector<1x128xf32>
    %99 = arith.addf %95, %98 : vector<1x128xf32>
    %cst = arith.constant 9.99999993E-9 : f32
    %100 = vector.broadcast %cst : f32 to vector<1x128xf32>
    %101 = arith.addf %99, %100 : vector<1x128xf32>
    %cst_7 = arith.constant 1.000000e+00 : f32
    %102 = vector.broadcast %cst_7 : f32 to vector<1x128xf32>
    %103 = arith.divf %102, %101 : vector<1x128xf32>
    %104 = arith.mulf %63, %103 : vector<1x128xf32>
    %105 = arith.mulf %81, %103 : vector<1x128xf32>
    %cst_8 = arith.constant 1.500000e+01 : f32
    %106 = vector.broadcast %cst_8 : f32 to vector<1x128xf32>
    %107 = arith.divf %104, %106 : vector<1x128xf32>
    %cst_9 = arith.constant 5.000000e-01 : f32
    %108 = vector.broadcast %cst_9 : f32 to vector<1x128xf32>
    %109 = arith.subf %107, %108 : vector<1x128xf32>
    %cst_10 = arith.constant 2.000000e+00 : f32
    %110 = vector.broadcast %cst_10 : f32 to vector<1x128xf32>
    %111 = arith.mulf %109, %110 : vector<1x128xf32>
    %cst_11 = arith.constant 1.500000e+01 : f32
    %112 = vector.broadcast %cst_11 : f32 to vector<1x128xf32>
    %113 = arith.divf %105, %112 : vector<1x128xf32>
    %cst_12 = arith.constant 5.000000e-01 : f32
    %114 = vector.broadcast %cst_12 : f32 to vector<1x128xf32>
    %115 = arith.subf %113, %114 : vector<1x128xf32>
    %cst_13 = arith.constant 2.000000e+00 : f32
    %116 = vector.broadcast %cst_13 : f32 to vector<1x128xf32>
    %117 = arith.mulf %115, %116 : vector<1x128xf32>
    %cst_14 = arith.constant -1.000000e+00 : f32
    %118 = vector.broadcast %cst_14 : f32 to vector<1x128xf32>
    %119 = arith.cmpf oge, %111, %118 : vector<1x128xf32>
    %cst_15 = arith.constant 1.000000e+00 : f32
    %120 = vector.broadcast %cst_15 : f32 to vector<1x128xf32>
    %121 = arith.cmpf ole, %111, %120 : vector<1x128xf32>
    %122 = arith.andi %119, %121 : vector<1x128xi1>
    %cst_16 = arith.constant -1.000000e+00 : f32
    %123 = vector.broadcast %cst_16 : f32 to vector<1x128xf32>
    %124 = arith.cmpf oge, %117, %123 : vector<1x128xf32>
    %125 = arith.andi %122, %124 : vector<1x128xi1>
    %cst_17 = arith.constant 1.000000e+00 : f32
    %126 = vector.broadcast %cst_17 : f32 to vector<1x128xf32>
    %127 = arith.cmpf ole, %117, %126 : vector<1x128xf32>
    %128 = arith.andi %125, %127 : vector<1x128xi1>
    %129 = arith.extui %128 : vector<1x128xi1> to vector<1x128xi32>
    %130 = arith.sitofp %129 : vector<1x128xi32> to vector<1x128xf32>
    %c0_18 = arith.constant 0 : index
    %c0_19 = arith.constant 0 : index
    %c0_20 = arith.constant 0 : index
    %131 = vector.load %arg7[%c0_18, %c0_19, %c0_20] : memref<1x1x128xf32, #tpu.memory_space<vmem>>, vector<1x1x128xf32>
    %132 = vector.shape_cast %131 : vector<1x1x128xf32> to vector<1x128xf32>
    %133 = vector.shape_cast %130 : vector<1x128xf32> to vector<1x1x128xf32>
    tpu.vector_store %arg7[%c0_18, %c0_19, %c0_20], %133 {strides = array<i32>} : memref<1x1x128xf32, #tpu.memory_space<vmem>>, vector<1x1x128xf32>,
    %cst_21 = arith.constant 1.000000e+00 : f32
    %134 = vector.broadcast %cst_21 : f32 to vector<1x128xf32>
    %135 = arith.addf %111, %134 : vector<1x128xf32>
    %cst_22 = arith.constant 5.000000e-01 : f32
    %136 = vector.broadcast %cst_22 : f32 to vector<1x128xf32>
    %137 = arith.mulf %135, %136 : vector<1x128xf32>
    %cst_23 = arith.constant 1.500000e+01 : f32
    %138 = vector.broadcast %cst_23 : f32 to vector<1x128xf32>
    %139 = arith.mulf %137, %138 : vector<1x128xf32>
    %cst_24 = arith.constant 0.000000e+00 : f32
    %cst_25 = arith.constant 1.500000e+01 : f32
    %140 = vector.broadcast %cst_24 : f32 to vector<1x128xf32>
    %141 = arith.maximumf %140, %139 : vector<1x128xf32>
    %142 = vector.broadcast %cst_25 : f32 to vector<1x128xf32>
    %143 = arith.minimumf %142, %141 : vector<1x128xf32>
    %cst_26 = arith.constant 1.000000e+00 : f32
    %144 = vector.broadcast %cst_26 : f32 to vector<1x128xf32>
    %145 = arith.addf %117, %144 : vector<1x128xf32>
    %cst_27 = arith.constant 5.000000e-01 : f32
    %146 = vector.broadcast %cst_27 : f32 to vector<1x128xf32>
    %147 = arith.mulf %145, %146 : vector<1x128xf32>
    %cst_28 = arith.constant 1.500000e+01 : f32
    %148 = vector.broadcast %cst_28 : f32 to vector<1x128xf32>
    %149 = arith.mulf %147, %148 : vector<1x128xf32>
    %cst_29 = arith.constant 0.000000e+00 : f32
    %cst_30 = arith.constant 1.500000e+01 : f32
    %150 = vector.broadcast %cst_29 : f32 to vector<1x128xf32>
    %151 = arith.maximumf %150, %149 : vector<1x128xf32>
    %152 = vector.broadcast %cst_30 : f32 to vector<1x128xf32>
    %153 = arith.minimumf %152, %151 : vector<1x128xf32>
    %154 = tpu.iota {dimensions = array<i32: 0>} : vector<16x128xi32>
    %155 = arith.sitofp %154 : vector<16x128xi32> to vector<16x128xf32>
    %156 = tpu.iota {dimensions = array<i32: 0>} : vector<16x128xi32>
    %157 = arith.sitofp %156 : vector<16x128xi32> to vector<16x128xf32>
    %158 = vector.broadcast %143 : vector<1x128xf32> to vector<16x128xf32>
    %159 = arith.subf %158, %155 : vector<16x128xf32>
    %160 = math.absf %159 : vector<16x128xf32>
    %cst_31 = arith.constant 1.000000e+00 : f32
    %161 = vector.broadcast %cst_31 : f32 to vector<16x128xf32>
    %162 = arith.subf %161, %160 : vector<16x128xf32>
    %cst_32 = arith.constant 0.000000e+00 : f32
    %163 = vector.broadcast %cst_32 : f32 to vector<16x128xf32>
    %164 = arith.maximumf %163, %162 : vector<16x128xf32>
    %165 = vector.broadcast %153 : vector<1x128xf32> to vector<16x128xf32>
    %166 = arith.subf %165, %157 : vector<16x128xf32>
    %167 = math.absf %166 : vector<16x128xf32>
    %cst_33 = arith.constant 1.000000e+00 : f32
    %168 = vector.broadcast %cst_33 : f32 to vector<16x128xf32>
    %169 = arith.subf %168, %167 : vector<16x128xf32>
    %cst_34 = arith.constant 0.000000e+00 : f32
    %170 = vector.broadcast %cst_34 : f32 to vector<16x128xf32>
    %171 = arith.maximumf %170, %169 : vector<16x128xf32>
    %c0_35 = arith.constant 0 : index
    %c0_36 = arith.constant 0 : index
    %c0_37 = arith.constant 0 : index
    %172 = vector.load %arg5[%c0_35, %c0_36, %c0_37] : memref<1x64x16xf32, #tpu.memory_space<vmem>>, vector<1x64x16xf32>
    %173 = vector.shape_cast %172 : vector<1x64x16xf32> to vector<64x16xf32>
    %cst_38 = arith.constant dense<0.000000e+00> : vector<64x128xf32>
    %174 = tpu.matmul %173, %164, %cst_38 {dimension_numbers = #tpu.dot_dimension_numbers<[1], [0], [0], [1], [0, 0, 1, 1], [], []>} : vector<64x16xf32>, vector<16x128xf32>, vector<64x128xf32> -> vector<64x128xf32>
    %175 = vector.shape_cast %174 : vector<64x128xf32> to vector<4x16x128xf32>
    %176 = vector.shape_cast %171 : vector<16x128xf32> to vector<1x16x128xf32>
    %177 = vector.broadcast %176 : vector<1x16x128xf32> to vector<4x16x128xf32>
    %178 = arith.mulf %175, %177 : vector<4x16x128xf32>
    %cst_39 = arith.constant dense<0.000000e+00> : vector<4x128xf32>
    %179 = vector.multi_reduction <add>, %178, %cst_39 [1] : vector<4x16x128xf32> to vector<4x128xf32>
    %c0_40 = arith.constant 0 : index
    %c0_41 = arith.constant 0 : index
    %c0_42 = arith.constant 0 : index
    %180 = vector.load %arg6[%c0_40, %c0_41, %c0_42] : memref<1x4x128xf32, #tpu.memory_space<vmem>>, vector<1x4x128xf32>
    %181 = vector.shape_cast %180 : vector<1x4x128xf32> to vector<4x128xf32>
    %182 = vector.shape_cast %179 : vector<4x128xf32> to vector<1x4x128xf32>
    tpu.vector_store %arg6[%c0_40, %c0_41, %c0_42], %182 {strides = array<i32>} : memref<1x4x128xf32, #tpu.memory_space<vmem>>, vector<1x4x128xf32>,
    return
  }
  func.func @transform_0(%arg0: i32, %arg1: i32) -> (i32, i32) {
    %c0_i32 = arith.constant 0 : i32
    %c0_i32_0 = arith.constant 0 : i32
    %c0_i32_1 = arith.constant 0 : i32
    return %c0_i32, %c0_i32_0 : i32, i32
  }
  func.func @transform_1(%arg0: i32, %arg1: i32) -> (i32, i32) {
    %c0_i32 = arith.constant 0 : i32
    %c0_i32_0 = arith.constant 0 : i32
    return %c0_i32, %arg1 : i32, i32
  }
  func.func @transform_2(%arg0: i32, %arg1: i32) -> (i32, i32, i32) {
    %c0_i32 = arith.constant 0 : i32
    %c0_i32_0 = arith.constant 0 : i32
    return %arg0, %c0_i32, %arg1 : i32, i32, i32
  }
  func.func @transform_3(%arg0: i32, %arg1: i32) -> (i32, i32, i32) {
    %c0_i32 = arith.constant 0 : i32
    %c0_i32_0 = arith.constant 0 : i32
    %c0_i32_1 = arith.constant 0 : i32
    return %arg0, %c0_i32, %c0_i32_0 : i32, i32, i32
  }
  func.func @transform_4(%arg0: i32, %arg1: i32) -> (i32, i32, i32) {
    %c0_i32 = arith.constant 0 : i32
    %c0_i32_0 = arith.constant 0 : i32
    return %arg0, %c0_i32, %arg1 : i32, i32, i32
  }
  func.func @transform_5(%arg0: i32, %arg1: i32) -> (i32, i32, i32) {
    %c0_i32 = arith.constant 0 : i32
    %c0_i32_0 = arith.constant 0 : i32
    return %arg0, %c0_i32, %arg1 : i32, i32, i32
  }
}

</mosaic_0001>

<llo_original>
// kernel: tpu_custom_call.1
$region0: #{tpu_custom_call.1}
  #allocation0 [shape = 'u32[]', space=smem, size = 0x4, offset = 0x4, fixed_abs, tag = 'smem constant byte address 0x4 - core index']
  #allocation1 [shape = 'u32[144,128]{1,0:T(1,128)}', space=vmem, size = 0x12000, scoped, tag = 'internal scratch']
  %s0 = inlined_call_operand.vmem [shape: f32[2,21], index: 0, kind: input, shape index: {}]
  %s1 = inlined_call_operand.vmem [shape: f32[2,256], index: 1, kind: input, shape index: {}]
  %s2 = inlined_call_operand.vmem [shape: f32[2,1,256], index: 2, kind: input, shape index: {}]
  %s3 = inlined_call_operand.vmem [shape: f32[2,64,16], index: 3, kind: input, shape index: {}]
  %s4 = inlined_call_operand.hbm [shape: f32[2,4,256], index: 4, kind: output, shape index: {0}]
  %s5 = inlined_call_operand.hbm [shape: f32[2,1,256], index: 5, kind: output, shape index: {1}]
  %6 = xla_tuple %s4, %s5
  %s7 = sld [smem:[#allocation0]]
  $region61: #{tpu_custom_call.1} parent=0
    _
  %s9 = ssub.s32 1, %s7
  %s10 = scalar_select 0, %s9, %s7
  $region1: #{tpu_custom_call.1} parent=0
    #allocation2 [shape = 'u8[1024]{0}', space=smem, size = 0x400, scoped, tag = 'input window, operand 0, single buffered']
    #allocation3 [shape = 's32[2]{0}', space=sflag, size = 0x8, scoped, tag = 'scoped memory for tpu_custom_call.1']
    #allocation4 [shape = 's32[2]{0}', space=sflag, size = 0x8, scoped, tag = 'scoped memory for tpu_custom_call.1']
    #allocation5 [shape = 'u8[4096]{0}', space=vmem, size = 0x1000, scoped, tag = 'output window, operand 0']
    #allocation6 [shape = 'u8[1024]{0}', space=vmem, size = 0x400, scoped, tag = 'output window, operand 1']
    #allocation7 [shape = 's32[2]{0}', space=sflag, size = 0x8, scoped, tag = 'scoped memory for tpu_custom_call.1']
    %11 = vsyncpa [#allocation4], 0
    %12 = vsyncpa [#allocation3], 0
    %s13 = scalar_lea.sflag [#allocation3], 1
    %14 = vsyncpa %s13, 0
    %15 = vsyncpa [#allocation7], 0
    %s16 = scalar_lea.sflag [#allocation7], 1
    %17 = vsyncpa %s16, 0
    loop: start=0, step=1, limit=6
    $region2: #{tpu_custom_call.1} parent=1 // loop_pre_header
      _
    $region3: #{tpu_custom_call.1} parent=1 // loop_header
      %s19 = sphi 0, %s23
      %p20 = scmp.ge.s32.totalorder %s19, 6
      %s26 = sphi 0, %s38
      %s27 = sphi 0, %s34
      %s28 = sphi 0, %s26
      %s29 = sphi 0, %s27
      %s30 = sphi 0, %s28
      %s31 = sphi 0, %s29
      %s39 = sphi 0, %s39
      %s41 = sphi 0, %s39
      %s42 = sphi 0, %s41
      %s56 = sphi 0, %s42
      %s62 = sphi 0, %s64
      %s65 = sphi 0, %s62
      %s66 = sphi 0, %s65
      %s82 = sphi 0, %s66
      %s90 = sphi 0, %s92
      %s93 = sphi 0, %s90
      %s94 = sphi 0, %s93
      %s110 = sphi 0, %s94
      %s116 = sphi 0, %s118
      %s119 = sphi 0, %s116
      %s120 = sphi 0, %s119
      %s136 = sphi 0, %s120
      %s144 = sphi 0, %s146
      %s147 = sphi 0, %s144
      %s148 = sphi 0, %s147
      %s164 = sphi 0, %s148
      %s172 = sphi 0, %s174
      %s175 = sphi 0, %s172
      %s176 = sphi 0, %s175
      %s192 = sphi 0, %s176
    $region4: #{tpu_custom_call.1} parent=1 // loop_header_branch
      %22 = sbr.rel (%p20) target = $region8
    $region5: #{tpu_custom_call.1} parent=1 // loop_body
      %s24 = ssub.s32 %s19, 1
      %s25 = ssub.s32 %s19, 2
      %s32 = sadd.s32 1, %s27
      %p33 = scmp.ge.s32.totalorder %s32, 2
      %s34 = scalar_select %p33, 0, %s32
      %s35 = sadd.s32 1, %s26
      %s36 = scalar_select %p33, %s35, %s26
      %p37 = scmp.ge.s32.totalorder %s36, 2
      %s38 = scalar_select %p37, 0, %s36
      %s40 = sadd.s32 %s39, 1
      %p43 = scmp.eq.s32.totalorder %s19, 3
      %p44 = scmp.ne.s32.totalorder %s39, %s41
      %p45 = scmp.eq.s32.totalorder %s19, 0
      %p46 = por %p44, %p45
      %p47 = scmp.ne.s32.totalorder %s39, %s41
      %p48 = scmp.eq.s32.totalorder %s24, 3
      %p49 = por %p47, %p48
      %p50 = scmp.ne.s32.totalorder %s41, %s42
      %p51 = scmp.eq.s32.totalorder %s24, 0
      %p52 = por %p50, %p51
      %p53 = scmp.ne.s32.totalorder %s41, %s42
      %p54 = scmp.eq.s32.totalorder %s25, 3
      %p55 = por %p53, %p54
      %p57 = scmp.ne.s32.totalorder %s42, %s56
      %p58 = scmp.eq.s32.totalorder %s25, 0
      %p59 = por %p57, %p58
      %s60 = ssub.s32 %s27, %s34
      %p61 = scmp.eq.s32.totalorder %s60, 0
      %s63 = sadd.s32 %s62, 1
      %s64 = scalar_select %p61, %s62, %s63
      %p67 = pneg %p61
      %p68 = scmp.eq.s32.totalorder %s19, 3
      %p69 = por %p67, %p68
      %p70 = scmp.ne.s32.totalorder %s62, %s65
      %p71 = scmp.eq.s32.totalorder %s19, 0
      %p72 = por %p70, %p71
      %p73 = scmp.ne.s32.totalorder %s62, %s65
      %p74 = scmp.eq.s32.totalorder %s24, 3
      %p75 = por %p73, %p74
      %p76 = scmp.ne.s32.totalorder %s65, %s66
      %p77 = scmp.eq.s32.totalorder %s24, 0
      %p78 = por %p76, %p77
      %p79 = scmp.ne.s32.totalorder %s65, %s66
      %p80 = scmp.eq.s32.totalorder %s25, 3
      %p81 = por %p79, %p80
      %p83 = scmp.ne.s32.totalorder %s66, %s82
      %p84 = scmp.eq.s32.totalorder %s25, 0
      %p85 = por %p83, %p84
      %s86 = ssub.s32 %s26, %s38
      %s87 = ssub.s32 %s27, %s34
      %s88 = sor.u32 %s86, %s87
      %p89 = scmp.eq.s32.totalorder %s88, 0
      %s91 = sadd.s32 %s90, 1
      %s92 = scalar_select %p89, %s90, %s91
      %p95 = pneg %p89
      %p96 = scmp.eq.s32.totalorder %s19, 3
      %p97 = por %p95, %p96
      %p98 = scmp.ne.s32.totalorder %s90, %s93
      %p99 = scmp.eq.s32.totalorder %s19, 0
      %p100 = por %p98, %p99
      %p101 = scmp.ne.s32.totalorder %s90, %s93
      %p102 = scmp.eq.s32.totalorder %s24, 3
      %p103 = por %p101, %p102
      %p104 = scmp.ne.s32.totalorder %s93, %s94
      %p105 = scmp.eq.s32.totalorder %s24, 0
      %p106 = por %p104, %p105
      %p107 = scmp.ne.s32.totalorder %s93, %s94
      %p108 = scmp.eq.s32.totalorder %s25, 3
      %p109 = por %p107, %p108
      %p111 = scmp.ne.s32.totalorder %s94, %s110
      %p112 = scmp.eq.s32.totalorder %s25, 0
      %p113 = por %p111, %p112
      %s114 = ssub.s32 %s26, %s38
      %p115 = scmp.eq.s32.totalorder %s114, 0
      %s117 = sadd.s32 %s116, 1
      %s118 = scalar_select %p115, %s116, %s117
      %p121 = pneg %p115
      %p122 = scmp.eq.s32.totalorder %s19, 3
      %p123 = por %p121, %p122
      %p124 = scmp.ne.s32.totalorder %s116, %s119
      %p125 = scmp.eq.s32.totalorder %s19, 0
      %p126 = por %p124, %p125
      %p127 = scmp.ne.s32.totalorder %s116, %s119
      %p128 = scmp.eq.s32.totalorder %s24, 3
      %p129 = por %p127, %p128
      %p130 = scmp.ne.s32.totalorder %s119, %s120
      %p131 = scmp.eq.s32.totalorder %s24, 0
      %p132 = por %p130, %p131
      %p133 = scmp.ne.s32.totalorder %s119, %s120
      %p134 = scmp.eq.s32.totalorder %s25, 3
      %p135 = por %p133, %p134
      %p137 = scmp.ne.s32.totalorder %s120, %s136
      %p138 = scmp.eq.s32.totalorder %s25, 0
      %p139 = por %p137, %p138
      %s140 = ssub.s32 %s26, %s38
      %s141 = ssub.s32 %s27, %s34
      %s142 = sor.u32 %s140, %s141
      %p143 = scmp.eq.s32.totalorder %s142, 0
      %s145 = sadd.s32 %s144, 1
      %s146 = scalar_select %p143, %s144, %s145
      %p149 = pneg %p143
      %p150 = scmp.eq.s32.totalorder %s19, 3
      %p151 = por %p149, %p150
      %p152 = scmp.ne.s32.totalorder %s144, %s147
      %p153 = scmp.eq.s32.totalorder %s19, 0
      %p154 = por %p152, %p153
      %p155 = scmp.ne.s32.totalorder %s144, %s147
      %p156 = scmp.eq.s32.totalorder %s24, 3
      %p157 = por %p155, %p156
      %p158 = scmp.ne.s32.totalorder %s147, %s148
      %p159 = scmp.eq.s32.totalorder %s24, 0
      %p160 = por %p158, %p159
      %p161 = scmp.ne.s32.totalorder %s147, %s148
      %p162 = scmp.eq.s32.totalorder %s25, 3
      %p163 = por %p161, %p162
      %p165 = scmp.ne.s32.totalorder %s148, %s164
      %p166 = scmp.eq.s32.totalorder %s25, 0
      %p167 = por %p165, %p166
      %s168 = ssub.s32 %s26, %s38
      %s169 = ssub.s32 %s27, %s34
      %s170 = sor.u32 %s168, %s169
      %p171 = scmp.eq.s32.totalorder %s170, 0
      %s173 = sadd.s32 %s172, 1
      %s174 = scalar_select %p171, %s172, %s173
      %p177 = pneg %p171
      %p178 = scmp.eq.s32.totalorder %s19, 3
      %p179 = por %p177, %p178
      %p180 = scmp.ne.s32.totalorder %s172, %s175
      %p181 = scmp.eq.s32.totalorder %s19, 0
      %p182 = por %p180, %p181
      %p183 = scmp.ne.s32.totalorder %s172, %s175
      %p184 = scmp.eq.s32.totalorder %s24, 3
      %p185 = por %p183, %p184
      %p186 = scmp.ne.s32.totalorder %s175, %s176
      %p187 = scmp.eq.s32.totalorder %s24, 0
      %p188 = por %p186, %p187
      %p189 = scmp.ne.s32.totalorder %s175, %s176
      %p190 = scmp.eq.s32.totalorder %s25, 3
      %p191 = por %p189, %p190
      %p193 = scmp.ne.s32.totalorder %s176, %s192
      %p194 = scmp.eq.s32.totalorder %s25, 0
      %p195 = por %p193, %p194
      %p196 = scmp.le.s32.totalorder 1, %s19
      %p197 = scmp.lt.s32.totalorder %s19, 5
      %p198 = pnand %p196, %p197
      %p199 = pneg %p198
      // Predicated region
      $region9: #{tpu_custom_call.1} parent=5 // pred_check
        _
      $region10: #{tpu_custom_call.1} parent=5 // pred_check_branch
        %201 = sbr.rel (%p198) target = $region12
      $region11: #{tpu_custom_call.1} parent=5 // pred_region
        %s202 = ssub.s32 %s19, 1
        // Predicated region
        $region13: #{tpu_custom_call.1} parent=11 // pred_check
          %p203 = pneg %p52
        $region14: #{tpu_custom_call.1} parent=11 // pred_check_branch
          %205 = sbr.rel (%p203) target = $region16
        $region15: #{tpu_custom_call.1} parent=11 // pred_region
          %s207 = ssub.s32 32, 32
          %208 = vsyncadd [#allocation4], %s207
          %s210 = sshll.u32 %s0, 4
          %s211 = int_to_ptr.vmem [resolvable:$true] %s210
          %213 = dma.vmem_to_smem %s211, 32, [#allocation2], [#allocation4]
        $region16: #{tpu_custom_call.1} parent=11 // pred_fallthru
          _
      $region12: #{tpu_custom_call.1} parent=5 // pred_fallthru
        _
      %p214 = scmp.lt.s32.totalorder %s19, 4
      // Predicated region
      $region17: #{tpu_custom_call.1} parent=5 // pred_check
        %p215 = pneg %p214
      $region18: #{tpu_custom_call.1} parent=5 // pred_check_branch
        %217 = sbr.rel (%p215) target = $region20
      $region19: #{tpu_custom_call.1} parent=5 // pred_region
        // Predicated region
        $region21: #{tpu_custom_call.1} parent=19 // pred_check
          %p218 = pneg %p72
        $region22: #{tpu_custom_call.1} parent=19 // pred_check_branch
          %220 = sbr.rel (%p218) target = $region24
        $region23: #{tpu_custom_call.1} parent=19 // pred_region
          %p221 = scmp.lt.s32.totalorder %s27, 1
          %s222 = scalar_select %p221, %s27, 1
          %s223 = smul.addr %s222, 2
          %s224 = scalar_lea.vmem %s1, %s223
        $region24: #{tpu_custom_call.1} parent=19 // pred_fallthru
          _
        // Predicated region
        $region25: #{tpu_custom_call.1} parent=19 // pred_check
          %p225 = pneg %p100
        $region26: #{tpu_custom_call.1} parent=19 // pred_check_branch
          %227 = sbr.rel (%p225) target = $region28
        $region27: #{tpu_custom_call.1} parent=19 // pred_region
          %p228 = scmp.lt.s32.totalorder %s26, 1
          %s229 = scalar_select %p228, %s26, 1
          %p230 = scmp.lt.s32.totalorder %s27, 1
          %s231 = scalar_select %p230, %s27, 1
          %s232 = smul.addr %s229, 2
          %s233 = sadd.s32 %s231, %s232
          %s234 = scalar_lea.vmem %s2, %s233
        $region28: #{tpu_custom_call.1} parent=19 // pred_fallthru
          _
        // Predicated region
        $region29: #{tpu_custom_call.1} parent=19 // pred_check
          %p235 = pneg %p126
        $region30: #{tpu_custom_call.1} parent=19 // pred_check_branch
          %237 = sbr.rel (%p235) target = $region32
        $region31: #{tpu_custom_call.1} parent=19 // pred_region
          %p238 = scmp.lt.s32.totalorder %s26, 1
          %s239 = scalar_select %p238, %s26, 1
          %s240 = smul.addr %s239, 8
          %s241 = smul.addr %s240, 8
          %s242 = scalar_lea.vmem %s3, %s241
        $region32: #{tpu_custom_call.1} parent=19 // pred_fallthru
          _
      $region20: #{tpu_custom_call.1} parent=5 // pred_fallthru
        _
      %p243 = scmp.le.s32.totalorder 1, %s19
      %p244 = scmp.lt.s32.totalorder %s19, 5
      %p245 = pnand %p243, %p244
      %p246 = pneg %p245
      // Predicated region
      $region33: #{tpu_custom_call.1} parent=5 // pred_check
        _
      $region34: #{tpu_custom_call.1} parent=5 // pred_check_branch
        %248 = sbr.rel (%p245) target = $region36
      $region35: #{tpu_custom_call.1} parent=5 // pred_region
        %s249 = ssub.s32 %s19, 1
        // Predicated region
        $region37: #{tpu_custom_call.1} parent=35 // pred_check
          %p250 = pneg %p52
        $region38: #{tpu_custom_call.1} parent=35 // pred_check_branch
          %252 = sbr.rel (%p250) target = $region40
        $region39: #{tpu_custom_call.1} parent=35 // pred_region
          %253 = dma.done [#allocation4], 32
        $region40: #{tpu_custom_call.1} parent=35 // pred_fallthru
          _
        %254 = sfence
        %p255 = pneg %p52
        %p256 = pneg %p49
        %p257 = scmp.lt.s32.totalorder %s29, 1
        %s258 = scalar_select %p257, %s29, 1
        %s259 = smul.addr %s258, 2
        %s260 = scalar_lea.vmem %s1, %s259
        %p261 = pneg %p78
        %p262 = pneg %p75
        %p263 = scmp.lt.s32.totalorder %s28, 1
        %s264 = scalar_select %p263, %s28, 1
        %p265 = scmp.lt.s32.totalorder %s29, 1
        %s266 = scalar_select %p265, %s29, 1
        %s267 = smul.addr %s264, 2
        %s268 = sadd.s32 %s266, %s267
        %s269 = scalar_lea.vmem %s2, %s268
        %p270 = pneg %p106
        %p271 = pneg %p103
        %p272 = scmp.lt.s32.totalorder %s28, 1
        %s273 = scalar_select %p272, %s28, 1
        %s274 = smul.addr %s273, 8
        %s275 = smul.addr %s274, 8
        %s276 = scalar_lea.vmem %s3, %s275
        %p277 = pneg %p132
        %p278 = pneg %p129
        %p279 = pneg %p160
        %p280 = pneg %p157
        %s281 = sand.u32 %s147, 1
        %s282 = scalar_lea.sflag [#allocation3], %s281
        %s283 = sand.u32 %s147, 1
        %s284 = smul.addr %s283, 4
        %s285 = scalar_lea.vmem [#allocation5], %s284
        %p286 = pneg %p188
        %p287 = pneg %p185
        %s288 = sand.u32 %s175, 1
        %s289 = scalar_lea.sflag [#allocation7], %s288
        %s290 = sand.u32 %s175, 1
        %s291 = scalar_lea.vmem [#allocation6], %s290
        %p292 = scmp.lt.s32.totalorder %s29, 1
        %s293 = scalar_select %p292, %s29, 1
        %s294 = smul.addr %s293, 2
        %s295 = scalar_lea.vmem %s1, %s294
        %p296 = scmp.lt.s32.totalorder %s28, 1
        %s297 = scalar_select %p296, %s28, 1
        %p298 = scmp.lt.s32.totalorder %s29, 1
        %s299 = scalar_select %p298, %s29, 1
        %s300 = smul.addr %s297, 2
        %s301 = sadd.s32 %s299, %s300
        %s302 = scalar_lea.vmem %s2, %s301
        %p303 = scmp.lt.s32.totalorder %s28, 1
        %s304 = scalar_select %p303, %s28, 1
        %s305 = smul.addr %s304, 8
        %s306 = smul.addr %s305, 8
        %s307 = scalar_lea.vmem %s3, %s306
        %v308 = vld [vmem:[%s295] sm:$0x1]
        %v309 = vld [vmem:[%s295 + $0x1] sm:$0x1]
        %v310 = vld [vmem:[%s302] sm:$0x1]
        %s311 = smul.u32 %s28, 128
        %s312 = sld [smem:[#allocation2 + %s311]]
        %v313 = vstv %s312
        %v314 = vmul.f32 %v313, %v308
        %s315 = sadd.s32 %s311, 1
        %s316 = sld [smem:[#allocation2 + %s315]]
        %v317 = vstv %s316
        %v318 = vmul.f32 %v317, %v309
        %v319 = vadd.f32 %v314, %v318
        %s320 = sadd.s32 %s311, 2
        %s321 = sld [smem:[#allocation2 + %s320]]
        %v322 = vstv %s321
        %v323 = vadd.f32 %v319, %v322
        %v324 = vmul.f32 %v323, %v310
        %s325 = sadd.s32 %s311, 3
        %s326 = sld [smem:[#allocation2 + %s325]]
        %v327 = vstv %s326
        %v328 = vmul.f32 %v327, %v308
        %s329 = sadd.s32 %s311, 4
        %s330 = sld [smem:[#allocation2 + %s329]]
        %v331 = vstv %s330
        %v332 = vmul.f32 %v331, %v309
        %v333 = vadd.f32 %v328, %v332
        %s334 = sadd.s32 %s311, 5
        %s335 = sld [smem:[#allocation2 + %s334]]
        %v336 = vstv %s335
        %v337 = vadd.f32 %v333, %v336
        %v338 = vmul.f32 %v337, %v310
        %s339 = sadd.s32 %s311, 6
        %s340 = sld [smem:[#allocation2 + %s339]]
        %v341 = vstv %s340
        %v342 = vmul.f32 %v341, %v308
        %s343 = sadd.s32 %s311, 7
        %s344 = sld [smem:[#allocation2 + %s343]]
        %v345 = vstv %s344
        %v346 = vmul.f32 %v345, %v309
        %v347 = vadd.f32 %v342, %v346
        %s348 = sadd.s32 %s311, 8
        %s349 = sld [smem:[#allocation2 + %s348]]
        %v350 = vstv %s349
        %v351 = vadd.f32 %v347, %v350
        %v352 = vmul.f32 %v351, %v310
        %s353 = sadd.s32 %s311, 9
        %s354 = sld [smem:[#allocation2 + %s353]]
        %v355 = vstv %s354
        %v356 = vmul.f32 %v355, %v324
        %s357 = sadd.s32 %s311, 10
        %s358 = sld [smem:[#allocation2 + %s357]]
        %v359 = vstv %s358
        %v360 = vmul.f32 %v359, %v338
        %v361 = vadd.f32 %v356, %v360
        %s362 = sadd.s32 %s311, 11
        %s363 = sld [smem:[#allocation2 + %s362]]
        %v364 = vstv %s363
        %v365 = vmul.f32 %v364, %v352
        %v366 = vadd.f32 %v361, %v365
        %s367 = sadd.s32 %s311, 12
        %s368 = sld [smem:[#allocation2 + %s367]]
        %v369 = vstv %s368
        %v370 = vadd.f32 %v366, %v369
        %s371 = sadd.s32 %s311, 13
        %s372 = sld [smem:[#allocation2 + %s371]]
        %v373 = vstv %s372
        %v374 = vmul.f32 %v373, %v324
        %s375 = sadd.s32 %s311, 14
        %s376 = sld [smem:[#allocation2 + %s375]]
        %v377 = vstv %s376
        %v378 = vmul.f32 %v377, %v338
        %v379 = vadd.f32 %v374, %v378
        %s380 = sadd.s32 %s311, 15
        %s381 = sld [smem:[#allocation2 + %s380]]
        %v382 = vstv %s381
        %v383 = vmul.f32 %v382, %v352
        %v384 = vadd.f32 %v379, %v383
        %s385 = sadd.s32 %s311, 16
        %s386 = sld [smem:[#allocation2 + %s385]]
        %v387 = vstv %s386
        %v388 = vadd.f32 %v384, %v387
        %s389 = sadd.s32 %s311, 17
        %s390 = sld [smem:[#allocation2 + %s389]]
        %v391 = vstv %s390
        %v392 = vmul.f32 %v391, %v324
        %s393 = sadd.s32 %s311, 18
        %s394 = sld [smem:[#allocation2 + %s393]]
        %v395 = vstv %s394
        %v396 = vmul.f32 %v395, %v338
        %v397 = vadd.f32 %v392, %v396
        %s398 = sadd.s32 %s311, 19
        %s399 = sld [smem:[#allocation2 + %s398]]
        %v400 = vstv %s399
        %v401 = vmul.f32 %v400, %v352
        %v402 = vadd.f32 %v397, %v401
        %s403 = sadd.s32 %s311, 20
        %s404 = sld [smem:[#allocation2 + %s403]]
        %v405 = vstv %s404
        %v406 = vadd.f32 %v402, %v405
        %v407 = vadd.f32 %v406, 1e-08
        %v408 = vrcp.pop %v407
        %v409 = vmul.f32 1.0, %v408
        %v410 = vmul.f32 %v370, %v409
        %v411 = vmul.f32 %v388, %v409
        %v412 = vrcp.pop 15.0
        %v413 = vmul.f32 %v410, %v412
        %v414 = vsub.f32 %v413, 0.5
        %v415 = vmul.f32 %v414, 2.0
        %v416 = vmul.f32 %v411, %v412
        %v417 = vsub.f32 %v416, 0.5
        %v418 = vmul.f32 %v417, 2.0
        %vm419 = vcmp.ge.f32.partialorder %v415, -1.0
        %vm420 = vcmp.le.f32.partialorder %v415, 1.0
        %vm421 = vmand %vm419, %vm420
        %vm422 = vcmp.ge.f32.partialorder %v418, -1.0
        %vm423 = vmand %vm421, %vm422
        %vm424 = vcmp.le.f32.partialorder %v418, 1.0
        %vm425 = vmand %vm423, %vm424
        %v426 = vsel %vm425, 1, 0
        %v427 = vcvt.s32.f32 %v426
        %428 = vst [vmem:[%s291] sm:$0x1] %v427
        %v429 = vadd.f32 %v415, 1.0
        %v430 = vmul.f32 %v429, 0.5
        %v431 = vmul.f32 %v430, 15.0
        %v432 = vmax.f32 %v431, 0.0
        %v433 = vmin.f32 %v432, 15.0
        %v434 = vadd.f32 %v418, 1.0
        %v435 = vmul.f32 %v434, 0.5
        %v436 = vmul.f32 %v435, 15.0
        %v437 = vmax.f32 %v436, 0.0
        %v438 = vmin.f32 %v437, 15.0
        %v439 = vlaneseq
        %v440 = vshrl.u32 %v439, 7
        %v441 = vadd.s32 %v440, 8
        %v442 = vcvt.s32.f32 %v440
        %v443 = vcvt.s32.f32 %v441
        %v444 = vlaneseq
        %v445 = vshrl.u32 %v444, 7
        %v446 = vsub.s32 0, %v445
        %v447 = vrot.slane %v433, %v446
        %v448 = vsub.f32 %v447, %v442
        %v449 = vsub.f32 %v447, %v443
        %v450 = vand.u32 2147483647, %v448
        %v451 = vand.u32 2147483647, %v449
        %v452 = vsub.f32 1.0, %v450
        %v453 = vsub.f32 1.0, %v451
        %v454 = vmax.f32 %v452, 0.0
        %v455 = vmax.f32 %v453, 0.0
        %v456 = vlaneseq
        %v457 = vshrl.u32 %v456, 7
        %v458 = vsub.s32 0, %v457
        %v459 = vrot.slane %v438, %v458
        %v460 = vsub.f32 %v459, %v442
        %v461 = vsub.f32 %v459, %v443
        %v462 = vand.u32 2147483647, %v460
        %v463 = vand.u32 2147483647, %v461
        %v464 = vsub.f32 1.0, %v462
        %v465 = vsub.f32 1.0, %v463
        %v466 = vmax.f32 %v464, 0.0
        %v467 = vmax.f32 %v465, 0.0
        %v468 = vld [vmem:[%s307] sm:$0xff]
        %v469 = vld [vmem:[%s307 + $0x8] sm:$0xff]
        %v470 = vld [vmem:[%s307 + $0x10] sm:$0xff]
        %v471 = vld [vmem:[%s307 + $0x18] sm:$0xff]
        %v472 = vld [vmem:[%s307 + $0x20] sm:$0xff]
        %v473 = vld [vmem:[%s307 + $0x28] sm:$0xff]
        %v474 = vld [vmem:[%s307 + $0x30] sm:$0xff]
        %v475 = vld [vmem:[%s307 + $0x38] sm:$0xff]
        %vm476 = vcmask 130048
        %v478 = vsel %vm476, %v468, 0
        %v481 = vsel %vm476, %v469, 0
        %v484 = vsel %vm476, %v470, 0
        %v487 = vsel %vm476, %v471, 0
        %v490 = vsel %vm476, %v472, 0
        %v493 = vsel %vm476, %v473, 0
        %v496 = vsel %vm476, %v474, 0
        %v499 = vsel %vm476, %v475, 0
        %501 = vmatprep.subr.mxu0 0.0
        %502 = vmatpush1.msra.mxu0 %v454
        %503 = vmatprep.subr.mxu0 0.0
        %504 = vmatpush1.msra.mxu0 %v455
        %505 = vmatprep.subr.mxu0 0.0
        %506 = vmatpush1.msra.mxu0 0.0
        %507 = vmatprep.subr.mxu0 0.0
        %508 = vmatpush1.msra.mxu0 0.0
        %509 = vmatprep.subr.mxu0 0.0
        %510 = vmatpush1.msra.mxu0 0.0
        %511 = vmatprep.subr.mxu0 0.0
        %512 = vmatpush1.msra.mxu0 0.0
        %513 = vmatprep.subr.mxu0 0.0
        %514 = vmatpush1.msra.mxu0 0.0
        %515 = vmatprep.subr.mxu0 0.0
        %516 = vmatpush1.msra.mxu0 0.0
        %517 = vmatprep.subr.mxu0 0.0
        %518 = vmatpush1.msra.mxu0 0.0
        %519 = vmatprep.subr.mxu0 0.0
        %520 = vmatpush1.msra.mxu0 0.0
        %521 = vmatprep.subr.mxu0 0.0
        %522 = vmatpush1.msra.mxu0 0.0
        %523 = vmatprep.subr.mxu0 0.0
        %524 = vmatpush1.msra.mxu0 0.0
        %525 = vmatprep.subr.mxu0 0.0
        %526 = vmatpush1.msra.mxu0 0.0
        %527 = vmatprep.subr.mxu0 0.0
        %528 = vmatpush1.msra.mxu0 0.0
        %529 = vmatprep.subr.mxu0 0.0
        %530 = vmatpush1.msra.mxu0 0.0
        %531 = vmatprep.subr.mxu0 0.0
        %532 = vmatpush1.msra.mxu0 0.0
        %533 = vmatprep.subr.mxu0 0.0
        %534 = vmatpush1.msra.mxu0 0.0
        %535 = vmatprep.subr.mxu0 0.0
        %536 = vmatpush1.msra.mxu0 0.0
        %537 = vmatprep.subr.mxu0 0.0
        %538 = vmatpush1.msra.mxu0 0.0
        %539 = vmatprep.subr.mxu0 0.0
        %540 = vmatpush1.msra.mxu0 0.0
        %541 = vmatprep.subr.mxu0 0.0
        %542 = vmatpush1.msra.mxu0 0.0
        %543 = vmatprep.subr.mxu0 0.0
        %544 = vmatpush1.msra.mxu0 0.0
        %545 = vmatprep.subr.mxu0 0.0
        %546 = vmatpush1.msra.mxu0 0.0
        %547 = vmatprep.subr.mxu0 0.0
        %548 = vmatpush1.msra.mxu0 0.0
        %549 = vmatprep.subr.mxu0 0.0
        %550 = vmatpush1.msra.mxu0 0.0
        %551 = vmatprep.subr.mxu0 0.0
        %552 = vmatpush1.msra.mxu0 0.0
        %553 = vmatprep.subr.mxu0 0.0
        %554 = vmatpush1.msra.mxu0 0.0
        %555 = vmatprep.subr.mxu0 0.0
        %556 = vmatpush1.msra.mxu0 0.0
        %557 = vmatprep.subr.mxu0 0.0
        %558 = vmatpush1.msra.mxu0 0.0
        %559 = vmatprep.subr.mxu0 0.0
        %560 = vmatpush1.msra.mxu0 0.0
        %561 = vmatprep.subr.mxu0 0.0
        %562 = vmatpush1.msra.mxu0 0.0
        %563 = vmatprep.subr.mxu0 0.0
        %564 = vmatpush1.msra.mxu0 0.0
        %565 = vmatprep.mubr.f32.mxu0 0.0
        %566 = vmatmul.mubr.f32.gmra.mrb[0].mxu0 %v478
        %v567 = vpop.f32.mrb[0].mxu0
        %v568 = vadd.f32 0.0, %v567
        %v569 = vpop.f32.mrb[0].mxu0
        %570 = vmatprep.mubr.f32.mxu0 0.0
        %571 = vmatmul.mubr.f32.gmra.mrb[0].mxu0 %v481
        %v572 = vpop.f32.mrb[0].mxu0
        %v573 = vadd.f32 0.0, %v572
        %v574 = vpop.f32.mrb[0].mxu0
        %575 = vmatprep.mubr.f32.mxu0 0.0
        %576 = vmatmul.mubr.f32.gmra.mrb[0].mxu0 %v484
        %v577 = vpop.f32.mrb[0].mxu0
        %v578 = vadd.f32 0.0, %v577
        %v579 = vpop.f32.mrb[0].mxu0
        %580 = vmatprep.mubr.f32.mxu0 0.0
        %581 = vmatmul.mubr.f32.gmra.mrb[0].mxu0 %v487
        %v582 = vpop.f32.mrb[0].mxu0
        %v583 = vadd.f32 0.0, %v582
        %v584 = vpop.f32.mrb[0].mxu0
        %585 = vmatprep.mubr.f32.mxu0 0.0
        %586 = vmatmul.mubr.f32.gmra.mrb[0].mxu0 %v490
        %v587 = vpop.f32.mrb[0].mxu0
        %v588 = vadd.f32 0.0, %v587
        %v589 = vpop.f32.mrb[0].mxu0
        %590 = vmatprep.mubr.f32.mxu0 0.0
        %591 = vmatmul.mubr.f32.gmra.mrb[0].mxu0 %v493
        %v592 = vpop.f32.mrb[0].mxu0
        %v593 = vadd.f32 0.0, %v592
        %v594 = vpop.f32.mrb[0].mxu0
        %595 = vmatprep.mubr.f32.mxu0 0.0
        %596 = vmatmul.mubr.f32.gmra.mrb[0].mxu0 %v496
        %v597 = vpop.f32.mrb[0].mxu0
        %v598 = vadd.f32 0.0, %v597
        %v599 = vpop.f32.mrb[0].mxu0
        %600 = vmatprep.mubr.f32.mxu0 0.0
        %601 = vmatmul.mubr.f32.gmra.mrb[0].mxu0 %v499
        %v602 = vpop.f32.mrb[0].mxu0
        %v603 = vadd.f32 0.0, %v602
        %v604 = vpop.f32.mrb[0].mxu0
        %605 = vdwg.mxu0
        %v606 = vmul.f32 %v568, %v466
        %v607 = vmul.f32 %v573, %v467
        %v608 = vmul.f32 %v578, %v466
        %v609 = vmul.f32 %v583, %v467
        %v610 = vmul.f32 %v588, %v466
        %v611 = vmul.f32 %v593, %v467
        %v612 = vmul.f32 %v598, %v466
        %v613 = vmul.f32 %v603, %v467
        %v614 = vadd.f32 %v606, %v607
        %v615 = vrot.slane %v614, 4
        %v616 = vadd.f32 %v614, %v615
        %v617 = vrot.slane %v616, 2
        %v618 = vadd.f32 %v616, %v617
        %v619 = vrot.slane %v618, 1
        %v620 = vadd.f32 %v618, %v619
        %v621 = vadd.f32 %v608, %v609
        %v622 = vrot.slane %v621, 4
        %v623 = vadd.f32 %v621, %v622
        %v624 = vrot.slane %v623, 2
        %v625 = vadd.f32 %v623, %v624
        %v626 = vrot.slane %v625, 1
        %v627 = vadd.f32 %v625, %v626
        %v628 = vadd.f32 %v610, %v611
        %v629 = vrot.slane %v628, 4
        %v630 = vadd.f32 %v628, %v629
        %v631 = vrot.slane %v630, 2
        %v632 = vadd.f32 %v630, %v631
        %v633 = vrot.slane %v632, 1
        %v634 = vadd.f32 %v632, %v633
        %v635 = vadd.f32 %v612, %v613
        %v636 = vrot.slane %v635, 4
        %v637 = vadd.f32 %v635, %v636
        %v638 = vrot.slane %v637, 2
        %v639 = vadd.f32 %v637, %v638
        %v640 = vrot.slane %v639, 1
        %v641 = vadd.f32 %v639, %v640
        %vm646 = vcmask 1041409
        %v647 = vsel %vm646, %v627, %v620
        %vm648 = vcmask 1042434
        %v649 = vsel %vm648, %v634, %v647
        %vm650 = vcmask 1043459
        %v651 = vsel %vm650, %v641, %v649
        %653 = vst [vmem:[%s285] sm:$0xf] %v651
        %s654 = sand.u32 %s147, 1
        %s655 = scalar_lea.sflag [#allocation3], %s654
        %s656 = sand.u32 %s147, 1
        %s657 = smul.addr %s656, 4
        %s658 = scalar_lea.vmem [#allocation5], %s657
        %s659 = sand.u32 %s175, 1
        %s660 = scalar_lea.sflag [#allocation7], %s659
        %s661 = sand.u32 %s175, 1
        %s662 = scalar_lea.vmem [#allocation6], %s661
        // Predicated region
        $region41: #{tpu_custom_call.1} parent=35 // pred_check
          %p663 = pneg %p157
        $region42: #{tpu_custom_call.1} parent=35 // pred_check_branch
          %665 = sbr.rel (%p663) target = $region44
        $region43: #{tpu_custom_call.1} parent=35 // pred_region
          %s667 = ssub.s32 64, 64
          %668 = vsyncadd %s655, %s667
          %s669 = smul.addr %s28, 2
          %s670 = sadd.s32 %s29, %s669
          %s671 = smul.addr %s670, 64
          %s672 = scalar_lea.hbm %s4, %s671
          %s674 = sshll.u32 %s658, 4
          %s675 = int_to_ptr.vmem [resolvable:$true] %s674
          %677 = dma.vmem_to_hbm [thread:$0]  %s675, 64, %s672, %s655
        $region44: #{tpu_custom_call.1} parent=35 // pred_fallthru
          _
        // Predicated region
        $region45: #{tpu_custom_call.1} parent=35 // pred_check
          %p678 = pneg %p185
        $region46: #{tpu_custom_call.1} parent=35 // pred_check_branch
          %680 = sbr.rel (%p678) target = $region48
        $region47: #{tpu_custom_call.1} parent=35 // pred_region
          %s682 = ssub.s32 16, 16
          %683 = vsyncadd %s660, %s682
          %s684 = smul.addr %s28, 2
          %s685 = sadd.s32 %s29, %s684
          %s686 = smul.addr %s685, 16
          %s687 = scalar_lea.hbm %s5, %s686
          %s689 = sshll.u32 %s662, 4
          %s690 = int_to_ptr.vmem [resolvable:$true] %s689
          %692 = dma.vmem_to_hbm [thread:$0]  %s690, 16, %s687, %s660
        $region48: #{tpu_custom_call.1} parent=35 // pred_fallthru
          _
      $region36: #{tpu_custom_call.1} parent=5 // pred_fallthru
        _
      %p693 = scmp.le.s32.totalorder 2, %s19
      // Predicated region
      $region49: #{tpu_custom_call.1} parent=5 // pred_check
        %p694 = pneg %p693
      $region50: #{tpu_custom_call.1} parent=5 // pred_check_branch
        %696 = sbr.rel (%p694) target = $region52
      $region51: #{tpu_custom_call.1} parent=5 // pred_region
        %s697 = ssub.s32 %s19, 2
        // Predicated region
        $region53: #{tpu_custom_call.1} parent=51 // pred_check
          %p698 = pneg %p163
        $region54: #{tpu_custom_call.1} parent=51 // pred_check_branch
          %700 = sbr.rel (%p698) target = $region56
        $region55: #{tpu_custom_call.1} parent=51 // pred_region
          %s701 = sand.u32 %s148, 1
          %s702 = scalar_lea.sflag [#allocation3], %s701
          %s703 = sand.u32 %s148, 1
          %s704 = smul.addr %s703, 4
          %s705 = scalar_lea.vmem [#allocation5], %s704
          %706 = dma.done %s702, 64
        $region56: #{tpu_custom_call.1} parent=51 // pred_fallthru
          _
        // Predicated region
        $region57: #{tpu_custom_call.1} parent=51 // pred_check
          %p707 = pneg %p191
        $region58: #{tpu_custom_call.1} parent=51 // pred_check_branch
          %709 = sbr.rel (%p707) target = $region60
        $region59: #{tpu_custom_call.1} parent=51 // pred_region
          %s710 = sand.u32 %s176, 1
          %s711 = scalar_lea.sflag [#allocation7], %s710
          %s712 = sand.u32 %s176, 1
          %s713 = scalar_lea.vmem [#allocation6], %s712
          %714 = dma.done %s711, 16
        $region60: #{tpu_custom_call.1} parent=51 // pred_fallthru
          _
      $region52: #{tpu_custom_call.1} parent=5 // pred_fallthru
        _
    $region6: #{tpu_custom_call.1} parent=1 // loop_footer
      %s23 = sadd.s32 1, %s19
    $region7: #{tpu_custom_call.1} parent=1 // loop_footer_branch
      %18 = sbr.rel target = $region3
    $region8: #{tpu_custom_call.1} parent=1 // loop_exit
      _
    %715 = vsyncpa [#allocation3], 1
    %s716 = scalar_lea.sflag [#allocation3], 1
    %717 = vsyncpa %s716, 1
    %718 = vsyncpa [#allocation7], 1
    %s719 = scalar_lea.sflag [#allocation7], 1
    %720 = vsyncpa %s719, 1
    %721 = vsyncpa [#allocation4], 1
    %s722 = scalar_lea.sflag [#allocation4], 1
    %723 = vsyncpa %s722, 1

</llo_original>
